<compile_context>
chip_gen: v5e
topology: v5e:2x2
jax: 0.10.0
libtpu: 0.0.40
codegen_flags: <defaults>
</compile_context>

<pallas_src>
import functools

import jax
import jax.numpy as jnp
from jax.experimental import pallas as pl
from jax.experimental.pallas import tpu as pltpu

LANE = 128  # lane width / padding granularity


def _round_up(x, m):
    return (x + m - 1) // m * m


def policy_kernel(ids_ref, sim_ref, emb_ref,
                  w1_ref, b1_ref, w2_ref, b2_ref, w3_ref, b3_ref,
                  out_ref, x_ref, *, embed_dim, vocab_size):
    """Row-gather embedding -> [emb | sim | 0...] -> (Linear,ReLU)x2 -> Linear -> softmax."""
    tb, v_pad = out_ref.shape
    base = pl.program_id(0) * tb

    # Embedding lookup: ids live in SMEM (scalar prefetch); copy one table row per
    # batch row into the activation scratch.  O(TB) tiny copies, no MXU/VPU waste.
    def gather_row(b, carry):
        tok = ids_ref[base + b]
        x_ref[pl.ds(b, 1), :] = emb_ref[pl.ds(tok, 1), :]
        return carry

    jax.lax.fori_loop(0, tb, gather_row, 0)

    # Fused torch.cat((embedded, similarity), dim=1): similarity goes into feature
    # column `embed_dim` (that column of the zero-padded table rows is exactly 0).
    x_ref[:, embed_dim:embed_dim + 1] = sim_ref[...]

    # MLP: bf16 operands on the MXU, f32 accumulation, f32 elementwise math.
    x = x_ref[...].astype(jnp.bfloat16)
    h1 = jnp.dot(x, w1_ref[...], preferred_element_type=jnp.float32) + b1_ref[...]
    h1 = jnp.maximum(h1, 0.0).astype(jnp.bfloat16)
    h2 = jnp.dot(h1, w2_ref[...], preferred_element_type=jnp.float32) + b2_ref[...]
    h2 = jnp.maximum(h2, 0.0).astype(jnp.bfloat16)
    logits = jnp.dot(h2, w3_ref[...], preferred_element_type=jnp.float32) + b3_ref[...]

    # Padded vocab lanes must not take softmax mass.
    if vocab_size < v_pad:
        lane = jax.lax.broadcasted_iota(jnp.int32, logits.shape, 1)
        logits = jnp.where(lane < vocab_size, logits, jnp.float32(-1e30))

    # Numerically-stable softmax with EXACT normalization (rows sum to 1).
    m = jnp.max(logits, axis=-1, keepdims=True)
    e = jnp.exp(logits - m)
    s = jnp.sum(e, axis=-1, keepdims=True)
    out_ref[...] = e * (1.0 / s)


def _pick_batch_tile(batch):
    b8 = _round_up(batch, 8)
    if b8 >= 256:
        return 128                    # full 128-row M per MXU pass, still >=2 grid steps
    if b8 >= 16:
        return _round_up(b8 // 2, 8)  # >=2 grid steps so v7x's 2nd TensorCore gets work
    return b8


def feedforward_policy_forward(input_ids, similarity, params, *, batch_tile=None):
    """input_ids: int (B,), similarity: float (B,) -> probs f32 (B, vocab_size)."""
    emb = params["embedding"]                 # (V_pad, K_pad) f32, zero padded
    v_pad, k_pad = emb.shape
    h_pad = params["w1"].shape[1]
    vocab_size = params["vocab_size"]
    embed_dim = params["embedding_dim"]

    batch = int(input_ids.shape[0])
    if batch_tile is None:
        batch_tile = _pick_batch_tile(batch)
    b_pad = _round_up(batch, batch_tile)

    # ids -> 1-D SMEM scalar-prefetch operand; clamp so a bad id can't become an
    # unchecked OOB VMEM read.  sim stays a tiny (TB,1) VMEM column block.
    ids = jnp.zeros((b_pad,), jnp.int32).at[:batch].set(
        jnp.clip(input_ids.astype(jnp.int32), 0, vocab_size - 1))
    sim = jnp.zeros((b_pad, 1), jnp.float32).at[:batch, 0].set(
        similarity.astype(jnp.float32))

    grid = (b_pad // batch_tile,)

    def fixed(shape):
        # Weights/biases: same block every grid step -> stay resident in VMEM.
        return pl.BlockSpec(shape, lambda i, ids_ref: (0, 0))

    def nbytes(a):
        return a.size * a.dtype.itemsize

    weight_bytes = sum(nbytes(params[k]) for k in
                       ("embedding", "w1", "b1", "w2", "b2", "w3", "b3"))
    tile_bytes = batch_tile * (k_pad * 4 + v_pad * 4 + 8)
    vmem_limit = int(min(100 << 20,
                         max(16 << 20, 2 * (weight_bytes + tile_bytes) + (2 << 20))))

    flops = 2 * b_pad * (k_pad * h_pad + h_pad * h_pad + h_pad * v_pad)
    bytes_accessed = nbytes(ids) + nbytes(sim) + weight_bytes + 4 * b_pad * v_pad

    kernel = functools.partial(policy_kernel,
                               embed_dim=embed_dim, vocab_size=vocab_size)

    out = pl.pallas_call(
        kernel,
        out_shape=jax.ShapeDtypeStruct((b_pad, v_pad), jnp.float32),
        grid_spec=pltpu.PrefetchScalarGridSpec(
            num_scalar_prefetch=1,              # input_ids -> SMEM
            grid=grid,
            in_specs=[
                pl.BlockSpec((batch_tile, 1), lambda i, ids_ref: (i, 0)),  # similarity
                fixed((v_pad, k_pad)),                                     # embedding
                fixed((k_pad, h_pad)), fixed((1, h_pad)),                  # w1, b1
                fixed((h_pad, h_pad)), fixed((1, h_pad)),                  # w2, b2
                fixed((h_pad, v_pad)), fixed((1, v_pad)),                  # w3, b3
            ],
            out_specs=pl.BlockSpec((batch_tile, v_pad), lambda i, ids_ref: (i, 0)),
            scratch_shapes=[pltpu.VMEM((batch_tile, k_pad), jnp.float32)],
        ),
        compiler_params=pltpu.CompilerParams(
            dimension_semantics=("parallel",),
            vmem_limit_bytes=vmem_limit,
        ),
        cost_estimate=pl.CostEstimate(
            flops=flops,
            transcendentals=b_pad * v_pad,
            bytes_accessed=bytes_accessed,
        ),
    )(ids, sim, emb,
      params["w1"], params["b1"],
      params["w2"], params["b2"],
      params["w3"], params["b3"])

    return out[:batch, :vocab_size]


def init_params(key, vocab_size, hidden_dim, embedding_dim):
    """Synthetic weights, stored pre-padded to lane-aligned shapes (padding is zero)."""
    in_dim = embedding_dim + 1
    v_pad = _round_up(vocab_size, LANE)
    h_pad = _round_up(hidden_dim, LANE)
    k_pad = _round_up(in_dim, LANE)

    ks = jax.random.split(key, 7)

    def lin(kw, fan_in, fan_out):
        return (jax.random.normal(kw, (fan_in, fan_out), jnp.float32)
                / jnp.sqrt(jnp.float32(fan_in)))

    emb = jax.random.normal(ks[0], (vocab_size, embedding_dim), jnp.float32)
    w1 = lin(ks[1], in_dim, hidden_dim)
    b1 = jax.random.normal(ks[2], (1, hidden_dim), jnp.float32) * 0.01
    w2 = lin(ks[3], hidden_dim, hidden_dim)
    b2 = jax.random.normal(ks[4], (1, hidden_dim), jnp.float32) * 0.01
    w3 = lin(ks[5], hidden_dim, vocab_size)
    b3 = jax.random.normal(ks[6], (1, vocab_size), jnp.float32) * 0.01

    def pad2(a, rows, cols, dtype):
        out = jnp.zeros((rows, cols), dtype)
        return out.at[:a.shape[0], :a.shape[1]].set(a.astype(dtype))

    return {
        "vocab_size": vocab_size,
        "hidden_dim": hidden_dim,
        "embedding_dim": embedding_dim,
        # Table stays f32: keeps the dynamic-sublane row gather on the 32-bit layout path.
        "embedding": pad2(emb, v_pad, k_pad, jnp.float32),
        # Matmul weights in bf16 (MXU-native on v6e/v7x); biases f32 (added post f32-accum).
        "w1": pad2(w1, k_pad, h_pad, jnp.bfloat16),
        "b1": pad2(b1, 1, h_pad, jnp.float32),
        "w2": pad2(w2, h_pad, h_pad, jnp.bfloat16),
        "b2": pad2(b2, 1, h_pad, jnp.float32),
        "w3": pad2(w3, h_pad, v_pad, jnp.bfloat16),
        "b3": pad2(b3, 1, v_pad, jnp.float32),
        # Unpadded f32 copies kept only for the pure-JAX reference check below.
        "_ref": {"embedding": emb, "w1": w1, "b1": b1,
                 "w2": w2, "b2": b2, "w3": w3, "b3": b3},
    }


def reference_forward(input_ids, similarity, ref):
    x = jnp.concatenate([ref["embedding"][input_ids], similarity[:, None]], axis=1)
    h1 = jnp.maximum(x @ ref["w1"] + ref["b1"], 0.0)
    h2 = jnp.maximum(h1 @ ref["w2"] + ref["b2"], 0.0)
    logits = h2 @ ref["w3"] + ref["b3"]
    return jax.nn.softmax(logits, axis=-1)


if __name__ == "__main__":
    vocab_size, hidden_dim, embedding_dim = 32, 32, 16
    batch = 12   # exercises batch padding and a 2-step "parallel" grid

    key = jax.random.PRNGKey(0)
    k_param, k_ids, k_sim = jax.random.split(key, 3)

    params = init_params(k_param, vocab_size, hidden_dim, embedding_dim)
    input_ids = jax.random.randint(k_ids, (batch,), 0, vocab_size, dtype=jnp.int32)
    similarity = jax.random.uniform(k_sim, (batch,), dtype=jnp.float32)

    probs = feedforward_policy_forward(input_ids, similarity, params)
    probs = jax.block_until_ready(probs)

    # Sanity: shape, rows sum to 1 (exact normalization), matches pure-JAX f32 reference
    # within bf16 matmul tolerance.
    assert probs.shape == (batch, vocab_size)
    assert jnp.allclose(jnp.sum(probs, axis=-1), 1.0, atol=1e-4)
    ref_probs = reference_forward(input_ids, similarity, params["_ref"])
    assert jnp.allclose(probs, ref_probs, atol=3e-3, rtol=3e-2)

    print("KERNEL_OK")
</pallas_src>

<mosaic_0001>
module attributes {stable_mosaic.version = 11 : i64} {
  func.func @policy_kernel(%arg0: i32, %arg1: memref<16xi32, #tpu.memory_space<smem>>, %arg2: memref<8x1xf32, #tpu.memory_space<vmem>>, %arg3: memref<128x128xf32, #tpu.memory_space<vmem>>, %arg4: memref<128x128xbf16, #tpu.memory_space<vmem>>, %arg5: memref<1x128xf32, #tpu.memory_space<vmem>>, %arg6: memref<128x128xbf16, #tpu.memory_space<vmem>>, %arg7: memref<1x128xf32, #tpu.memory_space<vmem>>, %arg8: memref<128x128xbf16, #tpu.memory_space<vmem>>, %arg9: memref<1x128xf32, #tpu.memory_space<vmem>>, %arg10: memref<8x128xf32, #tpu.memory_space<vmem>>, %arg11: memref<8x128xf32, #tpu.memory_space<vmem>>) attributes {dimension_semantics = [#tpu.dimension_semantics<parallel>], iteration_bounds = array<i64: 2>, scalar_prefetch = 1 : i64, scratch_operands = 1 : i64, tpu.core_type = #tpu.core_type<tc>, window_params = [{transform_indices = @transform_0, window_bounds = array<i64: 8, 1>}, {pipeline_mode = #tpu.pipeline_mode<synchronous>, transform_indices = @transform_1, window_bounds = array<i64: 128, 128>}, {pipeline_mode = #tpu.pipeline_mode<synchronous>, transform_indices = @transform_2, window_bounds = array<i64: 128, 128>}, {pipeline_mode = #tpu.pipeline_mode<synchronous>, transform_indices = @transform_3, window_bounds = array<i64: 1, 128>}, {pipeline_mode = #tpu.pipeline_mode<synchronous>, transform_indices = @transform_4, window_bounds = array<i64: 128, 128>}, {pipeline_mode = #tpu.pipeline_mode<synchronous>, transform_indices = @transform_5, window_bounds = array<i64: 1, 128>}, {pipeline_mode = #tpu.pipeline_mode<synchronous>, transform_indices = @transform_6, window_bounds = array<i64: 128, 128>}, {pipeline_mode = #tpu.pipeline_mode<synchronous>, transform_indices = @transform_7, window_bounds = array<i64: 1, 128>}, {transform_indices = @transform_8, window_bounds = array<i64: 8, 128>}]} {
    %c8_i32 = arith.constant 8 : i32
    %0 = arith.muli %arg0, %c8_i32 : i32
    %c0_i32 = arith.constant 0 : i32
    %c8_i32_0 = arith.constant 8 : i32
    %1 = arith.addi %c0_i32, %c8_i32_0 : i32
    %c1_i32 = arith.constant 1 : i32
    scf.for %arg12 = %c0_i32 to %1 step %c1_i32  : i32 {
      %44 = arith.addi %0, %arg12 : i32
      %45 = arith.index_cast %44 : i32 to index
      %46 = memref.load %arg1[%45] : memref<16xi32, #tpu.memory_space<smem>>
      %47 = arith.index_cast %46 : i32 to index
      %c0_28 = arith.constant 0 : index
      %48 = vector.load %arg3[%47, %c0_28] : memref<128x128xf32, #tpu.memory_space<vmem>>, vector<1x128xf32>
      %49 = arith.index_cast %arg12 : i32 to index
      %c0_29 = arith.constant 0 : index
      %50 = vector.load %arg11[%49, %c0_29] : memref<8x128xf32, #tpu.memory_space<vmem>>, vector<1x128xf32>
      tpu.vector_store %arg11[%49, %c0_29], %48 {strides = array<i32>} : memref<8x128xf32, #tpu.memory_space<vmem>>, vector<1x128xf32>,
    }
    %c8_i32_1 = arith.constant 8 : i32
    %c0 = arith.constant 0 : index
    %c0_2 = arith.constant 0 : index
    %2 = vector.load %arg2[%c0, %c0_2] : memref<8x1xf32, #tpu.memory_space<vmem>>, vector<8x1xf32>
    %c0_3 = arith.constant 0 : index
    %c16 = arith.constant 16 : index
    %3 = vector.load %arg11[%c0_3, %c16] : memref<8x128xf32, #tpu.memory_space<vmem>>, vector<8x1xf32>
    tpu.vector_store %arg11[%c0_3, %c16], %2 {strides = array<i32>} : memref<8x128xf32, #tpu.memory_space<vmem>>, vector<8x1xf32>,
    %c0_4 = arith.constant 0 : index
    %c0_5 = arith.constant 0 : index
    %4 = vector.load %arg11[%c0_4, %c0_5] : memref<8x128xf32, #tpu.memory_space<vmem>>, vector<8x128xf32>
    %5 = arith.truncf %4 : vector<8x128xf32> to vector<8x128xbf16>
    %c0_6 = arith.constant 0 : index
    %c0_7 = arith.constant 0 : index
    %6 = vector.load %arg4[%c0_6, %c0_7] : memref<128x128xbf16, #tpu.memory_space<vmem>>, vector<128x128xbf16>
    %cst = arith.constant dense<0.000000e+00> : vector<8x128xf32>
    %7 = tpu.matmul %5, %6, %cst {dimension_numbers = #tpu.dot_dimension_numbers<[1], [0], [0], [1], [0, 0, 1, 1], [], []>} : vector<8x128xbf16>, vector<128x128xbf16>, vector<8x128xf32> -> vector<8x128xf32>
    %c0_8 = arith.constant 0 : index
    %c0_9 = arith.constant 0 : index
    %8 = vector.load %arg5[%c0_8, %c0_9] : memref<1x128xf32, #tpu.memory_space<vmem>>, vector<1x128xf32>
    %9 = vector.broadcast %8 : vector<1x128xf32> to vector<8x128xf32>
    %10 = arith.addf %7, %9 : vector<8x128xf32>
    %cst_10 = arith.constant 0.000000e+00 : f32
    %11 = vector.broadcast %cst_10 : f32 to vector<8x128xf32>
    %12 = arith.maximumf %10, %11 : vector<8x128xf32>
    %13 = arith.truncf %12 : vector<8x128xf32> to vector<8x128xbf16>
    %c0_11 = arith.constant 0 : index
    %c0_12 = arith.constant 0 : index
    %14 = vector.load %arg6[%c0_11, %c0_12] : memref<128x128xbf16, #tpu.memory_space<vmem>>, vector<128x128xbf16>
    %cst_13 = arith.constant dense<0.000000e+00> : vector<8x128xf32>
    %15 = tpu.matmul %13, %14, %cst_13 {dimension_numbers = #tpu.dot_dimension_numbers<[1], [0], [0], [1], [0, 0, 1, 1], [], []>} : vector<8x128xbf16>, vector<128x128xbf16>, vector<8x128xf32> -> vector<8x128xf32>
    %c0_14 = arith.constant 0 : index
    %c0_15 = arith.constant 0 : index
    %16 = vector.load %arg7[%c0_14, %c0_15] : memref<1x128xf32, #tpu.memory_space<vmem>>, vector<1x128xf32>
    %17 = vector.broadcast %16 : vector<1x128xf32> to vector<8x128xf32>
    %18 = arith.addf %15, %17 : vector<8x128xf32>
    %cst_16 = arith.constant 0.000000e+00 : f32
    %19 = vector.broadcast %cst_16 : f32 to vector<8x128xf32>
    %20 = arith.maximumf %18, %19 : vector<8x128xf32>
    %21 = arith.truncf %20 : vector<8x128xf32> to vector<8x128xbf16>
    %c0_17 = arith.constant 0 : index
    %c0_18 = arith.constant 0 : index
    %22 = vector.load %arg8[%c0_17, %c0_18] : memref<128x128xbf16, #tpu.memory_space<vmem>>, vector<128x128xbf16>
    %cst_19 = arith.constant dense<0.000000e+00> : vector<8x128xf32>
    %23 = tpu.matmul %21, %22, %cst_19 {dimension_numbers = #tpu.dot_dimension_numbers<[1], [0], [0], [1], [0, 0, 1, 1], [], []>} : vector<8x128xbf16>, vector<128x128xbf16>, vector<8x128xf32> -> vector<8x128xf32>
    %c0_20 = arith.constant 0 : index
    %c0_21 = arith.constant 0 : index
    %24 = vector.load %arg9[%c0_20, %c0_21] : memref<1x128xf32, #tpu.memory_space<vmem>>, vector<1x128xf32>
    %25 = vector.broadcast %24 : vector<1x128xf32> to vector<8x128xf32>
    %26 = arith.addf %23, %25 : vector<8x128xf32>
    %27 = tpu.iota {dimensions = array<i32: 1>} : vector<8x128xi32>
    %c32_i32 = arith.constant 32 : i32
    %28 = vector.broadcast %c32_i32 : i32 to vector<8x128xi32>
    %29 = arith.cmpi slt, %27, %28 : vector<8x128xi32>
    %cst_22 = arith.constant -1.000000e+30 : f32
    %30 = vector.broadcast %cst_22 : f32 to vector<8x128xf32>
    %31 = arith.select %29, %26, %30 : vector<8x128xi1>, vector<8x128xf32>
    %cst_23 = arith.constant dense<0xFF800000> : vector<8xf32>
    %32 = vector.multi_reduction <maximumf>, %31, %cst_23 [1] : vector<8x128xf32> to vector<8xf32>
    %33 = vector.shape_cast %32 : vector<8xf32> to vector<8x1xf32>
    %34 = vector.broadcast %33 : vector<8x1xf32> to vector<8x128xf32>
    %35 = arith.subf %31, %34 : vector<8x128xf32>
    %36 = math.exp %35 : vector<8x128xf32>
    %cst_24 = arith.constant dense<0.000000e+00> : vector<8xf32>
    %37 = vector.multi_reduction <add>, %36, %cst_24 [1] : vector<8x128xf32> to vector<8xf32>
    %38 = vector.shape_cast %37 : vector<8xf32> to vector<8x1xf32>
    %cst_25 = arith.constant 1.000000e+00 : f32
    %39 = vector.broadcast %cst_25 : f32 to vector<8x1xf32>
    %40 = arith.divf %39, %38 : vector<8x1xf32>
    %41 = vector.broadcast %40 : vector<8x1xf32> to vector<8x128xf32>
    %42 = arith.mulf %36, %41 : vector<8x128xf32>
    %c0_26 = arith.constant 0 : index
    %c0_27 = arith.constant 0 : index
    %43 = vector.load %arg10[%c0_26, %c0_27] : memref<8x128xf32, #tpu.memory_space<vmem>>, vector<8x128xf32>
    tpu.vector_store %arg10[%c0_26, %c0_27], %42 {strides = array<i32>} : memref<8x128xf32, #tpu.memory_space<vmem>>, vector<8x128xf32>,
    return
  }
  func.func @transform_0(%arg0: i32, %arg1: memref<16xi32, #tpu.memory_space<smem>>) -> (i32, i32) {
    %c0_i32 = arith.constant 0 : i32
    %c0_i32_0 = arith.constant 0 : i32
    return %arg0, %c0_i32 : i32, i32
  }
  func.func @transform_1(%arg0: i32, %arg1: memref<16xi32, #tpu.memory_space<smem>>) -> (i32, i32) {
    %c0_i32 = arith.constant 0 : i32
    %c0_i32_0 = arith.constant 0 : i32
    %c0_i32_1 = arith.constant 0 : i32
    return %c0_i32, %c0_i32_0 : i32, i32
  }
  func.func @transform_2(%arg0: i32, %arg1: memref<16xi32, #tpu.memory_space<smem>>) -> (i32, i32) {
    %c0_i32 = arith.constant 0 : i32
    %c0_i32_0 = arith.constant 0 : i32
    %c0_i32_1 = arith.constant 0 : i32
    return %c0_i32, %c0_i32_0 : i32, i32
  }
  func.func @transform_3(%arg0: i32, %arg1: memref<16xi32, #tpu.memory_space<smem>>) -> (i32, i32) {
    %c0_i32 = arith.constant 0 : i32
    %c0_i32_0 = arith.constant 0 : i32
    %c0_i32_1 = arith.constant 0 : i32
    return %c0_i32, %c0_i32_0 : i32, i32
  }
  func.func @transform_4(%arg0: i32, %arg1: memref<16xi32, #tpu.memory_space<smem>>) -> (i32, i32) {
    %c0_i32 = arith.constant 0 : i32
    %c0_i32_0 = arith.constant 0 : i32
    %c0_i32_1 = arith.constant 0 : i32
    return %c0_i32, %c0_i32_0 : i32, i32
  }
  func.func @transform_5(%arg0: i32, %arg1: memref<16xi32, #tpu.memory_space<smem>>) -> (i32, i32) {
    %c0_i32 = arith.constant 0 : i32
    %c0_i32_0 = arith.constant 0 : i32
    %c0_i32_1 = arith.constant 0 : i32
    return %c0_i32, %c0_i32_0 : i32, i32
  }
  func.func @transform_6(%arg0: i32, %arg1: memref<16xi32, #tpu.memory_space<smem>>) -> (i32, i32) {
    %c0_i32 = arith.constant 0 : i32
    %c0_i32_0 = arith.constant 0 : i32
    %c0_i32_1 = arith.constant 0 : i32
    return %c0_i32, %c0_i32_0 : i32, i32
  }
  func.func @transform_7(%arg0: i32, %arg1: memref<16xi32, #tpu.memory_space<smem>>) -> (i32, i32) {
    %c0_i32 = arith.constant 0 : i32
    %c0_i32_0 = arith.constant 0 : i32
    %c0_i32_1 = arith.constant 0 : i32
    return %c0_i32, %c0_i32_0 : i32, i32
  }
  func.func @transform_8(%arg0: i32, %arg1: memref<16xi32, #tpu.memory_space<smem>>) -> (i32, i32) {
    %c0_i32 = arith.constant 0 : i32
    %c0_i32_0 = arith.constant 0 : i32
    return %arg0, %c0_i32 : i32, i32
  }
}

</mosaic_0001>

<llo_original>
// kernel: tpu_custom_call.1
$region0: #{tpu_custom_call.1}
  #allocation0 [shape = 'u32[]', space=smem, size = 0x4, offset = 0x4, fixed_abs, tag = 'smem constant byte address 0x4 - core index']
  #allocation1 [shape = 'u32[72,128]{1,0:T(1,128)}', space=vmem, size = 0x9000, scoped, tag = 'internal scratch']
  #allocation2 [shape = 'f32[8,128]{1,0:T(8,128)}', space=vmem, size = 0x1000, scoped, tag = 'scratch operand']
  #allocation3 [shape = 's32[1]{0}', space=sflag, size = 0x4, scoped, tag = 'scoped memory for tpu_custom_call.1']
  #allocation4 [shape = 'u8[512]{0}', space=smem, size = 0x200, scoped, tag = 'prefetched SMEM operand 0']
  %s0 = inlined_call_operand.vmem [shape: s32[16], index: 0, kind: input, shape index: {}]
  %s1 = inlined_call_operand.vmem [shape: f32[16,1], index: 1, kind: input, shape index: {}]
  %s2 = inlined_call_operand.hbm [shape: f32[128,128], index: 2, kind: input, shape index: {}]
  %s3 = inlined_call_operand.hbm [shape: bf16[128,128], index: 3, kind: input, shape index: {}]
  %s4 = inlined_call_operand.vmem [shape: f32[1,128], index: 4, kind: input, shape index: {}]
  %s5 = inlined_call_operand.hbm [shape: bf16[128,128], index: 5, kind: input, shape index: {}]
  %s6 = inlined_call_operand.vmem [shape: f32[1,128], index: 6, kind: input, shape index: {}]
  %s7 = inlined_call_operand.hbm [shape: bf16[128,128], index: 7, kind: input, shape index: {}]
  %s8 = inlined_call_operand.vmem [shape: f32[1,128], index: 8, kind: input, shape index: {}]
  %s9 = inlined_call_operand.hbm [shape: f32[16,128], index: 9, kind: output, shape index: {}]
  %s10 = sld [smem:[#allocation0]]
  $region88: #{tpu_custom_call.1} parent=0
    _
  %s12 = ssub.s32 1, %s10
  %s13 = scalar_select 0, %s12, %s10
  %s15 = sshll.u32 %s0, 4
  %s16 = int_to_ptr.vmem [resolvable:$true] %s15
  %18 = dma.vmem_to_smem %s16, 16, [#allocation4], [#allocation3]
  %20 = dma.done [#allocation3], 16
  %21 = sfence
  $region1: #{tpu_custom_call.1} parent=0
    #allocation5 [shape = 'u8[65536]{0}', space=vmem, size = 0x10000, scoped, tag = 'input window, operand 2, single buffered']
    #allocation6 [shape = 's32[2]{0}', space=sflag, size = 0x8, scoped, tag = 'scoped memory for tpu_custom_call.1']
    #allocation7 [shape = 's32[2]{0}', space=sflag, size = 0x8, scoped, tag = 'scoped memory for tpu_custom_call.1']
    #allocation8 [shape = 'u8[32768]{0}', space=vmem, size = 0x8000, scoped, tag = 'input window, operand 3, single buffered']
    #allocation9 [shape = 's32[1]{0}', space=sflag, size = 0x4, scoped, tag = 'scoped memory for tpu_custom_call.1']
    #allocation10 [shape = 'u8[32768]{0}', space=vmem, size = 0x8000, scoped, tag = 'input window, operand 5, single buffered']
    #allocation11 [shape = 'u8[32768]{0}', space=vmem, size = 0x8000, scoped, tag = 'input window, operand 7, single buffered']
    #allocation12 [shape = 's32[1]{0}', space=sflag, size = 0x4, scoped, tag = 'scoped memory for tpu_custom_call.1']
    #allocation13 [shape = 'u8[8192]{0}', space=vmem, size = 0x2000, scoped, tag = 'output window, operand 0']
    %22 = vsyncpa [#allocation6], 0
    %23 = vsyncpa [#allocation9], 0
    %24 = vsyncpa [#allocation12], 0
    %25 = vsyncpa [#allocation7], 0
    %s26 = scalar_lea.sflag [#allocation7], 1
    %27 = vsyncpa %s26, 0
    loop: start=0, step=1, limit=4
    $region2: #{tpu_custom_call.1} parent=1 // loop_pre_header
      _
    $region3: #{tpu_custom_call.1} parent=1 // loop_header
      %s29 = sphi 0, %s33
      %p30 = scmp.ge.s32.totalorder %s29, 4
      %s39 = sphi 0, %s41
      %s42 = sphi 0, %s39
      %s43 = sphi 0, %s42
      %s59 = sphi 0, %s43
      %s63 = sphi 0, %s63
      %s65 = sphi 0, %s63
      %s66 = sphi 0, %s65
      %s80 = sphi 0, %s66
      %s84 = sphi 0, %s84
      %s86 = sphi 0, %s84
      %s87 = sphi 0, %s86
      %s101 = sphi 0, %s87
      %s105 = sphi 0, %s105
      %s107 = sphi 0, %s105
      %s108 = sphi 0, %s107
      %s122 = sphi 0, %s108
      %s126 = sphi 0, %s126
      %s128 = sphi 0, %s126
      %s129 = sphi 0, %s128
      %s143 = sphi 0, %s129
      %s147 = sphi 0, %s147
      %s149 = sphi 0, %s147
      %s150 = sphi 0, %s149
      %s164 = sphi 0, %s150
      %s168 = sphi 0, %s168
      %s170 = sphi 0, %s168
      %s171 = sphi 0, %s170
      %s185 = sphi 0, %s171
      %s189 = sphi 0, %s189
      %s191 = sphi 0, %s189
      %s192 = sphi 0, %s191
      %s206 = sphi 0, %s192
      %s212 = sphi 0, %s214
      %s215 = sphi 0, %s212
      %s216 = sphi 0, %s215
      %s232 = sphi 0, %s216
    $region4: #{tpu_custom_call.1} parent=1 // loop_header_branch
      %32 = sbr.rel (%p30) target = $region8
    $region5: #{tpu_custom_call.1} parent=1 // loop_body
      %s34 = ssub.s32 %s29, 1
      %s35 = ssub.s32 %s29, 2
      %s36 = sadd.s32 %s29, 1
      %s37 = ssub.s32 %s29, %s36
      %p38 = scmp.eq.s32.totalorder %s37, 0
      %s40 = sadd.s32 %s39, 1
      %s41 = scalar_select %p38, %s39, %s40
      %p44 = pneg %p38
      %p45 = scmp.eq.s32.totalorder %s29, 1
      %p46 = por %p44, %p45
      %p47 = scmp.ne.s32.totalorder %s39, %s42
      %p48 = scmp.eq.s32.totalorder %s29, 0
      %p49 = por %p47, %p48
      %p50 = scmp.ne.s32.totalorder %s39, %s42
      %p51 = scmp.eq.s32.totalorder %s34, 1
      %p52 = por %p50, %p51
      %p53 = scmp.ne.s32.totalorder %s42, %s43
      %p54 = scmp.eq.s32.totalorder %s34, 0
      %p55 = por %p53, %p54
      %p56 = scmp.ne.s32.totalorder %s42, %s43
      %p57 = scmp.eq.s32.totalorder %s35, 1
      %p58 = por %p56, %p57
      %p60 = scmp.ne.s32.totalorder %s43, %s59
      %p61 = scmp.eq.s32.totalorder %s35, 0
      %p62 = por %p60, %p61
      %s64 = sadd.s32 %s63, 1
      %p67 = scmp.eq.s32.totalorder %s29, 1
      %p68 = scmp.ne.s32.totalorder %s63, %s65
      %p69 = scmp.eq.s32.totalorder %s29, 0
      %p70 = por %p68, %p69
      %p71 = scmp.ne.s32.totalorder %s63, %s65
      %p72 = scmp.eq.s32.totalorder %s34, 1
      %p73 = por %p71, %p72
      %p74 = scmp.ne.s32.totalorder %s65, %s66
      %p75 = scmp.eq.s32.totalorder %s34, 0
      %p76 = por %p74, %p75
      %p77 = scmp.ne.s32.totalorder %s65, %s66
      %p78 = scmp.eq.s32.totalorder %s35, 1
      %p79 = por %p77, %p78
      %p81 = scmp.ne.s32.totalorder %s66, %s80
      %p82 = scmp.eq.s32.totalorder %s35, 0
      %p83 = por %p81, %p82
      %s85 = sadd.s32 %s84, 1
      %p88 = scmp.eq.s32.totalorder %s29, 1
      %p89 = scmp.ne.s32.totalorder %s84, %s86
      %p90 = scmp.eq.s32.totalorder %s29, 0
      %p91 = por %p89, %p90
      %p92 = scmp.ne.s32.totalorder %s84, %s86
      %p93 = scmp.eq.s32.totalorder %s34, 1
      %p94 = por %p92, %p93
      %p95 = scmp.ne.s32.totalorder %s86, %s87
      %p96 = scmp.eq.s32.totalorder %s34, 0
      %p97 = por %p95, %p96
      %p98 = scmp.ne.s32.totalorder %s86, %s87
      %p99 = scmp.eq.s32.totalorder %s35, 1
      %p100 = por %p98, %p99
      %p102 = scmp.ne.s32.totalorder %s87, %s101
      %p103 = scmp.eq.s32.totalorder %s35, 0
      %p104 = por %p102, %p103
      %s106 = sadd.s32 %s105, 1
      %p109 = scmp.eq.s32.totalorder %s29, 1
      %p110 = scmp.ne.s32.totalorder %s105, %s107
      %p111 = scmp.eq.s32.totalorder %s29, 0
      %p112 = por %p110, %p111
      %p113 = scmp.ne.s32.totalorder %s105, %s107
      %p114 = scmp.eq.s32.totalorder %s34, 1
      %p115 = por %p113, %p114
      %p116 = scmp.ne.s32.totalorder %s107, %s108
      %p117 = scmp.eq.s32.totalorder %s34, 0
      %p118 = por %p116, %p117
      %p119 = scmp.ne.s32.totalorder %s107, %s108
      %p120 = scmp.eq.s32.totalorder %s35, 1
      %p121 = por %p119, %p120
      %p123 = scmp.ne.s32.totalorder %s108, %s122
      %p124 = scmp.eq.s32.totalorder %s35, 0
      %p125 = por %p123, %p124
      %s127 = sadd.s32 %s126, 1
      %p130 = scmp.eq.s32.totalorder %s29, 1
      %p131 = scmp.ne.s32.totalorder %s126, %s128
      %p132 = scmp.eq.s32.totalorder %s29, 0
      %p133 = por %p131, %p132
      %p134 = scmp.ne.s32.totalorder %s126, %s128
      %p135 = scmp.eq.s32.totalorder %s34, 1
      %p136 = por %p134, %p135
      %p137 = scmp.ne.s32.totalorder %s128, %s129
      %p138 = scmp.eq.s32.totalorder %s34, 0
      %p139 = por %p137, %p138
      %p140 = scmp.ne.s32.totalorder %s128, %s129
      %p141 = scmp.eq.s32.totalorder %s35, 1
      %p142 = por %p140, %p141
      %p144 = scmp.ne.s32.totalorder %s129, %s143
      %p145 = scmp.eq.s32.totalorder %s35, 0
      %p146 = por %p144, %p145
      %s148 = sadd.s32 %s147, 1
      %p151 = scmp.eq.s32.totalorder %s29, 1
      %p152 = scmp.ne.s32.totalorder %s147, %s149
      %p153 = scmp.eq.s32.totalorder %s29, 0
      %p154 = por %p152, %p153
      %p155 = scmp.ne.s32.totalorder %s147, %s149
      %p156 = scmp.eq.s32.totalorder %s34, 1
      %p157 = por %p155, %p156
      %p158 = scmp.ne.s32.totalorder %s149, %s150
      %p159 = scmp.eq.s32.totalorder %s34, 0
      %p160 = por %p158, %p159
      %p161 = scmp.ne.s32.totalorder %s149, %s150
      %p162 = scmp.eq.s32.totalorder %s35, 1
      %p163 = por %p161, %p162
      %p165 = scmp.ne.s32.totalorder %s150, %s164
      %p166 = scmp.eq.s32.totalorder %s35, 0
      %p167 = por %p165, %p166
      %s169 = sadd.s32 %s168, 1
      %p172 = scmp.eq.s32.totalorder %s29, 1
      %p173 = scmp.ne.s32.totalorder %s168, %s170
      %p174 = scmp.eq.s32.totalorder %s29, 0
      %p175 = por %p173, %p174
      %p176 = scmp.ne.s32.totalorder %s168, %s170
      %p177 = scmp.eq.s32.totalorder %s34, 1
      %p178 = por %p176, %p177
      %p179 = scmp.ne.s32.totalorder %s170, %s171
      %p180 = scmp.eq.s32.totalorder %s34, 0
      %p181 = por %p179, %p180
      %p182 = scmp.ne.s32.totalorder %s170, %s171
      %p183 = scmp.eq.s32.totalorder %s35, 1
      %p184 = por %p182, %p183
      %p186 = scmp.ne.s32.totalorder %s171, %s185
      %p187 = scmp.eq.s32.totalorder %s35, 0
      %p188 = por %p186, %p187
      %s190 = sadd.s32 %s189, 1
      %p193 = scmp.eq.s32.totalorder %s29, 1
      %p194 = scmp.ne.s32.totalorder %s189, %s191
      %p195 = scmp.eq.s32.totalorder %s29, 0
      %p196 = por %p194, %p195
      %p197 = scmp.ne.s32.totalorder %s189, %s191
      %p198 = scmp.eq.s32.totalorder %s34, 1
      %p199 = por %p197, %p198
      %p200 = scmp.ne.s32.totalorder %s191, %s192
      %p201 = scmp.eq.s32.totalorder %s34, 0
      %p202 = por %p200, %p201
      %p203 = scmp.ne.s32.totalorder %s191, %s192
      %p204 = scmp.eq.s32.totalorder %s35, 1
      %p205 = por %p203, %p204
      %p207 = scmp.ne.s32.totalorder %s192, %s206
      %p208 = scmp.eq.s32.totalorder %s35, 0
      %p209 = por %p207, %p208
      %s210 = ssub.s32 %s29, %s36
      %p211 = scmp.eq.s32.totalorder %s210, 0
      %s213 = sadd.s32 %s212, 1
      %s214 = scalar_select %p211, %s212, %s213
      %p217 = pneg %p211
      %p218 = scmp.eq.s32.totalorder %s29, 1
      %p219 = por %p217, %p218
      %p220 = scmp.ne.s32.totalorder %s212, %s215
      %p221 = scmp.eq.s32.totalorder %s29, 0
      %p222 = por %p220, %p221
      %p223 = scmp.ne.s32.totalorder %s212, %s215
      %p224 = scmp.eq.s32.totalorder %s34, 1
      %p225 = por %p223, %p224
      %p226 = scmp.ne.s32.totalorder %s215, %s216
      %p227 = scmp.eq.s32.totalorder %s34, 0
      %p228 = por %p226, %p227
      %p229 = scmp.ne.s32.totalorder %s215, %s216
      %p230 = scmp.eq.s32.totalorder %s35, 1
      %p231 = por %p229, %p230
      %p233 = scmp.ne.s32.totalorder %s216, %s232
      %p234 = scmp.eq.s32.totalorder %s35, 0
      %p235 = por %p233, %p234
      %p236 = scmp.le.s32.totalorder 1, %s29
      %p237 = scmp.lt.s32.totalorder %s29, 3
      %p238 = pnand %p236, %p237
      %p239 = pneg %p238
      // Predicated region
      $region9: #{tpu_custom_call.1} parent=5 // pred_check
        _
      $region10: #{tpu_custom_call.1} parent=5 // pred_check_branch
        %241 = sbr.rel (%p238) target = $region12
      $region11: #{tpu_custom_call.1} parent=5 // pred_region
        %s242 = ssub.s32 %s29, 1
        // Predicated region
        $region13: #{tpu_custom_call.1} parent=11 // pred_check
          %p243 = pneg %p76
        $region14: #{tpu_custom_call.1} parent=11 // pred_check_branch
          %245 = sbr.rel (%p243) target = $region16
        $region15: #{tpu_custom_call.1} parent=11 // pred_region
          %247 = vsyncadd [#allocation6], 0
          %s248 = sshll.u32 %s2, 4
          %s249 = int_to_ptr.hbm [resolvable:$true] %s248
          %s250 = sshll.u32 [#allocation5], 4
          %s251 = int_to_ptr.vmem [resolvable:$true] %s250
          %256 = dma.hbm_to_vmem [thread:$0]  %s249, 2048, %s251, [#allocation6], 128, 128, 8
        $region16: #{tpu_custom_call.1} parent=11 // pred_fallthru
          _
        // Predicated region
        $region17: #{tpu_custom_call.1} parent=11 // pred_check
          %p257 = pneg %p97
        $region18: #{tpu_custom_call.1} parent=11 // pred_check_branch
          %259 = sbr.rel (%p257) target = $region20
        $region19: #{tpu_custom_call.1} parent=11 // pred_region
          %261 = vsyncadd [#allocation9], 0
          %s262 = sshll.u32 %s3, 4
          %s263 = int_to_ptr.hbm [resolvable:$true] %s262
          %s264 = sshll.u32 [#allocation8], 4
          %s265 = int_to_ptr.vmem [resolvable:$true] %s264
          %270 = dma.hbm_to_vmem [thread:$0]  %s263, 1024, %s265, [#allocation9], 64, 64, 4
        $region20: #{tpu_custom_call.1} parent=11 // pred_fallthru
          _
        // Predicated region
        $region21: #{tpu_custom_call.1} parent=11 // pred_check
          %p271 = pneg %p118
        $region22: #{tpu_custom_call.1} parent=11 // pred_check_branch
          %273 = sbr.rel (%p271) target = $region24
        $region23: #{tpu_custom_call.1} parent=11 // pred_region
          _
        $region24: #{tpu_custom_call.1} parent=11 // pred_fallthru
          _
        // Predicated region
        $region25: #{tpu_custom_call.1} parent=11 // pred_check
          %p274 = pneg %p139
        $region26: #{tpu_custom_call.1} parent=11 // pred_check_branch
          %276 = sbr.rel (%p274) target = $region28
        $region27: #{tpu_custom_call.1} parent=11 // pred_region
          %278 = vsyncadd [#allocation9], 0
          %s279 = sshll.u32 %s5, 4
          %s280 = int_to_ptr.hbm [resolvable:$true] %s279
          %s281 = sshll.u32 [#allocation10], 4
          %s282 = int_to_ptr.vmem [resolvable:$true] %s281
          %287 = dma.hbm_to_vmem [thread:$0]  %s280, 1024, %s282, [#allocation9], 64, 64, 4
        $region28: #{tpu_custom_call.1} parent=11 // pred_fallthru
          _
        // Predicated region
        $region29: #{tpu_custom_call.1} parent=11 // pred_check
          %p288 = pneg %p160
        $region30: #{tpu_custom_call.1} parent=11 // pred_check_branch
          %290 = sbr.rel (%p288) target = $region32
        $region31: #{tpu_custom_call.1} parent=11 // pred_region
          _
        $region32: #{tpu_custom_call.1} parent=11 // pred_fallthru
          _
        // Predicated region
        $region33: #{tpu_custom_call.1} parent=11 // pred_check
          %p291 = pneg %p181
        $region34: #{tpu_custom_call.1} parent=11 // pred_check_branch
          %293 = sbr.rel (%p291) target = $region36
        $region35: #{tpu_custom_call.1} parent=11 // pred_region
          %295 = vsyncadd [#allocation12], 0
          %s296 = sshll.u32 %s7, 4
          %s297 = int_to_ptr.hbm [resolvable:$true] %s296
          %s298 = sshll.u32 [#allocation11], 4
          %s299 = int_to_ptr.vmem [resolvable:$true] %s298
          %304 = dma.hbm_to_vmem [thread:$0]  %s297, 1024, %s299, [#allocation12], 64, 64, 4
        $region36: #{tpu_custom_call.1} parent=11 // pred_fallthru
          _
        // Predicated region
        $region37: #{tpu_custom_call.1} parent=11 // pred_check
          %p305 = pneg %p202
        $region38: #{tpu_custom_call.1} parent=11 // pred_check_branch
          %307 = sbr.rel (%p305) target = $region40
        $region39: #{tpu_custom_call.1} parent=11 // pred_region
          _
        $region40: #{tpu_custom_call.1} parent=11 // pred_fallthru
          _
      $region12: #{tpu_custom_call.1} parent=5 // pred_fallthru
        _
      %p308 = scmp.lt.s32.totalorder %s29, 2
      // Predicated region
      $region41: #{tpu_custom_call.1} parent=5 // pred_check
        %p309 = pneg %p308
      $region42: #{tpu_custom_call.1} parent=5 // pred_check_branch
        %311 = sbr.rel (%p309) target = $region44
      $region43: #{tpu_custom_call.1} parent=5 // pred_region
        // Predicated region
        $region45: #{tpu_custom_call.1} parent=43 // pred_check
          %p312 = pneg %p49
        $region46: #{tpu_custom_call.1} parent=43 // pred_check_branch
          %314 = sbr.rel (%p312) target = $region48
        $region47: #{tpu_custom_call.1} parent=43 // pred_region
          %p315 = scmp.lt.s32.totalorder %s29, 1
          %s316 = scalar_select %p315, %s29, 1
          %s317 = smul.addr %s316, 8
          %s318 = scalar_lea.vmem %s1, %s317
        $region48: #{tpu_custom_call.1} parent=43 // pred_fallthru
          _
      $region44: #{tpu_custom_call.1} parent=5 // pred_fallthru
        _
      %p319 = scmp.le.s32.totalorder 1, %s29
      %p320 = scmp.lt.s32.totalorder %s29, 3
      %p321 = pnand %p319, %p320
      %p322 = pneg %p321
      // Predicated region
      $region49: #{tpu_custom_call.1} parent=5 // pred_check
        _
      $region50: #{tpu_custom_call.1} parent=5 // pred_check_branch
        %324 = sbr.rel (%p321) target = $region52
      $region51: #{tpu_custom_call.1} parent=5 // pred_region
        %s325 = ssub.s32 %s29, 1
        // Predicated region
        $region53: #{tpu_custom_call.1} parent=51 // pred_check
          %p326 = pneg %p76
        $region54: #{tpu_custom_call.1} parent=51 // pred_check_branch
          %328 = sbr.rel (%p326) target = $region56
        $region55: #{tpu_custom_call.1} parent=51 // pred_region
          %330 = dma.done [#allocation6], 2048
        $region56: #{tpu_custom_call.1} parent=51 // pred_fallthru
          _
        // Predicated region
        $region57: #{tpu_custom_call.1} parent=51 // pred_check
          %p331 = pneg %p97
        $region58: #{tpu_custom_call.1} parent=51 // pred_check_branch
          %333 = sbr.rel (%p331) target = $region60
        $region59: #{tpu_custom_call.1} parent=51 // pred_region
          %335 = dma.done [#allocation9], 1024
        $region60: #{tpu_custom_call.1} parent=51 // pred_fallthru
          _
        // Predicated region
        $region61: #{tpu_custom_call.1} parent=51 // pred_check
          %p336 = pneg %p139
        $region62: #{tpu_custom_call.1} parent=51 // pred_check_branch
          %338 = sbr.rel (%p336) target = $region64
        $region63: #{tpu_custom_call.1} parent=51 // pred_region
          %340 = dma.done [#allocation9], 1024
        $region64: #{tpu_custom_call.1} parent=51 // pred_fallthru
          _
        // Predicated region
        $region65: #{tpu_custom_call.1} parent=51 // pred_check
          %p341 = pneg %p181
        $region66: #{tpu_custom_call.1} parent=51 // pred_check_branch
          %343 = sbr.rel (%p341) target = $region68
        $region67: #{tpu_custom_call.1} parent=51 // pred_region
          %345 = dma.done [#allocation12], 1024
        $region68: #{tpu_custom_call.1} parent=51 // pred_fallthru
          _
        %p346 = scmp.lt.s32.totalorder %s34, 1
        %s347 = scalar_select %p346, %s34, 1
        %s348 = smul.addr %s347, 8
        %s349 = scalar_lea.vmem %s1, %s348
        %p350 = pneg %p55
        %p351 = pneg %p52
        %p352 = pneg %p76
        %p353 = pneg %p73
        %p354 = pneg %p97
        %p355 = pneg %p94
        %p356 = pneg %p118
        %p357 = pneg %p115
        %p358 = pneg %p139
        %p359 = pneg %p136
        %p360 = pneg %p160
        %p361 = pneg %p157
        %p362 = pneg %p181
        %p363 = pneg %p178
        %p364 = pneg %p202
        %p365 = pneg %p199
        %p366 = pneg %p228
        %p367 = pneg %p225
        %s368 = sand.u32 %s215, 1
        %s369 = scalar_lea.sflag [#allocation7], %s368
        %s370 = sand.u32 %s215, 1
        %s371 = smul.addr %s370, 8
        %s372 = scalar_lea.vmem [#allocation13], %s371
        %p373 = scmp.lt.s32.totalorder %s34, 1
        %s374 = scalar_select %p373, %s34, 1
        %s375 = smul.addr %s374, 8
        %s376 = scalar_lea.vmem %s1, %s375
        %s377 = smul.u32 %s34, 8
        loop: start=0, step=1, limit=8
        $region69: #{tpu_custom_call.1} parent=51 // loop_pre_header
          _
        $region70: #{tpu_custom_call.1} parent=51 // loop_header
          %s379 = sphi 0, %s383
          %p380 = scmp.ge.s32.totalorder %s379, 8
        $region71: #{tpu_custom_call.1} parent=51 // loop_header_branch
          %382 = sbr.rel (%p380) target = $region75
        $region72: #{tpu_custom_call.1} parent=51 // loop_body
          %s384 = sadd.s32 %s377, %s379
          %s385 = sld [smem:[#allocation4 + %s384]]
          %s386 = scalar_lea.vmem [#allocation5], %s385
          %v387 = vld [vmem:[%s386] sm:$0x1]
          %s388 = scalar_lea.vmem [#allocation2], %s379
          %389 = vst [vmem:[%s388] sm:$0x1] %v387
        $region73: #{tpu_custom_call.1} parent=51 // loop_footer
          %s383 = sadd.s32 1, %s379
        $region74: #{tpu_custom_call.1} parent=51 // loop_footer_branch
          %378 = sbr.rel target = $region70
        $region75: #{tpu_custom_call.1} parent=51 // loop_exit
          _
        %v390 = vld [vmem:[%s376] sm:$0xff]
        %392 = vrot.lane.b32.xlu0 %v390, 16
        %v393 = vpop.permute.xlu0 %392
        %vm395 = vcmask 138368
        %396 = vst.msk [vmem:[#allocation2] sm:$0xff] %vm395, %v393
        %v397 = vld [vmem:[#allocation2] sm:$0xff]
        %v398 = vpack.c.bf16 %v397, %v397
        %v399 = vld [vmem:[#allocation8] sm:$0xf]
        %v400 = vld [vmem:[#allocation8 + $0x4] sm:$0xf]
        %v401 = vld [vmem:[#allocation8 + $0x8] sm:$0xf]
        %v402 = vld [vmem:[#allocation8 + $0xc] sm:$0xf]
        %v403 = vld [vmem:[#allocation8 + $0x10] sm:$0xf]
        %v404 = vld [vmem:[#allocation8 + $0x14] sm:$0xf]
        %v405 = vld [vmem:[#allocation8 + $0x18] sm:$0xf]
        %v406 = vld [vmem:[#allocation8 + $0x1c] sm:$0xf]
        %v407 = vld [vmem:[#allocation8 + $0x20] sm:$0xf]
        %v408 = vld [vmem:[#allocation8 + $0x24] sm:$0xf]
        %v409 = vld [vmem:[#allocation8 + $0x28] sm:$0xf]
        %v410 = vld [vmem:[#allocation8 + $0x2c] sm:$0xf]
        %v411 = vld [vmem:[#allocation8 + $0x30] sm:$0xf]
        %v412 = vld [vmem:[#allocation8 + $0x34] sm:$0xf]
        %v413 = vld [vmem:[#allocation8 + $0x38] sm:$0xf]
        %v414 = vld [vmem:[#allocation8 + $0x3c] sm:$0xf]
        %v415 = vld [vmem:[%s4] sm:$0x1]
        %v417 = vperm.slane %v415, 0
        %v435 = vunpack.c.l.b16 %v399
        %v436 = vunpack.c.l.b16 %v400
        %v437 = vunpack.c.l.b16 %v401
        %v438 = vunpack.c.l.b16 %v402
        %v439 = vunpack.c.l.b16 %v403
        %v440 = vunpack.c.l.b16 %v404
        %v441 = vunpack.c.l.b16 %v405
        %v442 = vunpack.c.l.b16 %v406
        %v443 = vunpack.c.l.b16 %v407
        %v444 = vunpack.c.l.b16 %v408
        %v445 = vunpack.c.l.b16 %v409
        %v446 = vunpack.c.l.b16 %v410
        %v447 = vunpack.c.l.b16 %v411
        %v448 = vunpack.c.l.b16 %v412
        %v449 = vunpack.c.l.b16 %v413
        %v450 = vunpack.c.l.b16 %v414
        %v451 = vpack.c.b16 %v436, %v435
        %v452 = vpack.c.b16 %v438, %v437
        %v453 = vpack.c.b16 %v440, %v439
        %v454 = vpack.c.b16 %v442, %v441
        %v455 = vpack.c.b16 %v444, %v443
        %v456 = vpack.c.b16 %v446, %v445
        %v457 = vpack.c.b16 %v448, %v447
        %v458 = vpack.c.b16 %v450, %v449
        %467 = vmatpush.bf16.msra.mxu0 %v458
        %468 = vmatpush.bf16.msra.mxu0 %v457
        %469 = vmatpush.bf16.msra.mxu0 %v456
        %470 = vmatpush.bf16.msra.mxu0 %v455
        %471 = vmatpush.bf16.msra.mxu0 %v454
        %472 = vmatpush.bf16.msra.mxu0 %v453
        %473 = vmatpush.bf16.msra.mxu0 %v452
        %474 = vmatpush.bf16.msra.mxu0 %v451
        %475 = vmatmul.bf16.gmra.mxu0 %v398
        %v476 = vpop.f32.mrf.mxu0
        %v477 = vadd.f32 %v417, %v476
        %v478 = vpop.f32.mrf.mxu0
        %479 = vdwg.mxu0
        %v480 = vmax.f32 %v477, 0.0
        %v481 = vpack.c.bf16 %v480, %v480
        %v482 = vld [vmem:[#allocation10] sm:$0xf]
        %v483 = vld [vmem:[#allocation10 + $0x4] sm:$0xf]
        %v484 = vld [vmem:[#allocation10 + $0x8] sm:$0xf]
        %v485 = vld [vmem:[#allocation10 + $0xc] sm:$0xf]
        %v486 = vld [vmem:[#allocation10 + $0x10] sm:$0xf]
        %v487 = vld [vmem:[#allocation10 + $0x14] sm:$0xf]
        %v488 = vld [vmem:[#allocation10 + $0x18] sm:$0xf]
        %v489 = vld [vmem:[#allocation10 + $0x1c] sm:$0xf]
        %v490 = vld [vmem:[#allocation10 + $0x20] sm:$0xf]
        %v491 = vld [vmem:[#allocation10 + $0x24] sm:$0xf]
        %v492 = vld [vmem:[#allocation10 + $0x28] sm:$0xf]
        %v493 = vld [vmem:[#allocation10 + $0x2c] sm:$0xf]
        %v494 = vld [vmem:[#allocation10 + $0x30] sm:$0xf]
        %v495 = vld [vmem:[#allocation10 + $0x34] sm:$0xf]
        %v496 = vld [vmem:[#allocation10 + $0x38] sm:$0xf]
        %v497 = vld [vmem:[#allocation10 + $0x3c] sm:$0xf]
        %v498 = vld [vmem:[%s6] sm:$0x1]
        %v500 = vperm.slane %v498, 0
        %v518 = vunpack.c.l.b16 %v482
        %v519 = vunpack.c.l.b16 %v483
        %v520 = vunpack.c.l.b16 %v484
        %v521 = vunpack.c.l.b16 %v485
        %v522 = vunpack.c.l.b16 %v486
        %v523 = vunpack.c.l.b16 %v487
        %v524 = vunpack.c.l.b16 %v488
        %v525 = vunpack.c.l.b16 %v489
        %v526 = vunpack.c.l.b16 %v490
        %v527 = vunpack.c.l.b16 %v491
        %v528 = vunpack.c.l.b16 %v492
        %v529 = vunpack.c.l.b16 %v493
        %v530 = vunpack.c.l.b16 %v494
        %v531 = vunpack.c.l.b16 %v495
        %v532 = vunpack.c.l.b16 %v496
        %v533 = vunpack.c.l.b16 %v497
        %v534 = vpack.c.b16 %v519, %v518
        %v535 = vpack.c.b16 %v521, %v520
        %v536 = vpack.c.b16 %v523, %v522
        %v537 = vpack.c.b16 %v525, %v524
        %v538 = vpack.c.b16 %v527, %v526
        %v539 = vpack.c.b16 %v529, %v528
        %v540 = vpack.c.b16 %v531, %v530
        %v541 = vpack.c.b16 %v533, %v532
        %550 = vmatpush.bf16.msra.mxu0 %v541
        %551 = vmatpush.bf16.msra.mxu0 %v540
        %552 = vmatpush.bf16.msra.mxu0 %v539
        %553 = vmatpush.bf16.msra.mxu0 %v538
        %554 = vmatpush.bf16.msra.mxu0 %v537
        %555 = vmatpush.bf16.msra.mxu0 %v536
        %556 = vmatpush.bf16.msra.mxu0 %v535
        %557 = vmatpush.bf16.msra.mxu0 %v534
        %558 = vmatmul.bf16.gmra.mxu0 %v481
        %v559 = vpop.f32.mrf.mxu0
        %v560 = vadd.f32 %v500, %v559
        %v561 = vpop.f32.mrf.mxu0
        %562 = vdwg.mxu0
        %v563 = vmax.f32 %v560, 0.0
        %v564 = vpack.c.bf16 %v563, %v563
        %v565 = vld [vmem:[#allocation11] sm:$0xf]
        %v566 = vld [vmem:[#allocation11 + $0x4] sm:$0xf]
        %v567 = vld [vmem:[#allocation11 + $0x8] sm:$0xf]
        %v568 = vld [vmem:[#allocation11 + $0xc] sm:$0xf]
        %v569 = vld [vmem:[#allocation11 + $0x10] sm:$0xf]
        %v570 = vld [vmem:[#allocation11 + $0x14] sm:$0xf]
        %v571 = vld [vmem:[#allocation11 + $0x18] sm:$0xf]
        %v572 = vld [vmem:[#allocation11 + $0x1c] sm:$0xf]
        %v573 = vld [vmem:[#allocation11 + $0x20] sm:$0xf]
        %v574 = vld [vmem:[#allocation11 + $0x24] sm:$0xf]
        %v575 = vld [vmem:[#allocation11 + $0x28] sm:$0xf]
        %v576 = vld [vmem:[#allocation11 + $0x2c] sm:$0xf]
        %v577 = vld [vmem:[#allocation11 + $0x30] sm:$0xf]
        %v578 = vld [vmem:[#allocation11 + $0x34] sm:$0xf]
        %v579 = vld [vmem:[#allocation11 + $0x38] sm:$0xf]
        %v580 = vld [vmem:[#allocation11 + $0x3c] sm:$0xf]
        %v581 = vld [vmem:[%s8] sm:$0x1]
        %v583 = vperm.slane %v581, 0
        %v601 = vunpack.c.l.b16 %v565
        %v602 = vunpack.c.l.b16 %v566
        %v603 = vunpack.c.l.b16 %v567
        %v604 = vunpack.c.l.b16 %v568
        %v605 = vunpack.c.l.b16 %v569
        %v606 = vunpack.c.l.b16 %v570
        %v607 = vunpack.c.l.b16 %v571
        %v608 = vunpack.c.l.b16 %v572
        %v609 = vunpack.c.l.b16 %v573
        %v610 = vunpack.c.l.b16 %v574
        %v611 = vunpack.c.l.b16 %v575
        %v612 = vunpack.c.l.b16 %v576
        %v613 = vunpack.c.l.b16 %v577
        %v614 = vunpack.c.l.b16 %v578
        %v615 = vunpack.c.l.b16 %v579
        %v616 = vunpack.c.l.b16 %v580
        %v617 = vpack.c.b16 %v602, %v601
        %v618 = vpack.c.b16 %v604, %v603
        %v619 = vpack.c.b16 %v606, %v605
        %v620 = vpack.c.b16 %v608, %v607
        %v621 = vpack.c.b16 %v610, %v609
        %v622 = vpack.c.b16 %v612, %v611
        %v623 = vpack.c.b16 %v614, %v613
        %v624 = vpack.c.b16 %v616, %v615
        %633 = vmatpush.bf16.msra.mxu0 %v624
        %634 = vmatpush.bf16.msra.mxu0 %v623
        %635 = vmatpush.bf16.msra.mxu0 %v622
        %636 = vmatpush.bf16.msra.mxu0 %v621
        %637 = vmatpush.bf16.msra.mxu0 %v620
        %638 = vmatpush.bf16.msra.mxu0 %v619
        %639 = vmatpush.bf16.msra.mxu0 %v618
        %640 = vmatpush.bf16.msra.mxu0 %v617
        %641 = vmatmul.bf16.gmra.mxu0 %v564
        %v642 = vpop.f32.mrf.mxu0
        %v643 = vadd.f32 %v583, %v642
        %v644 = vpop.f32.mrf.mxu0
        %645 = vdwg.mxu0
        %v646 = vlaneseq
        %v647 = vand.u32 %v646, 127
        %vm648 = vcmp.lt.s32.totalorder %v647, 32
        %v649 = vsel %vm648, %v643, -1e+30
        %650 = vmax.xlane.f32.xlu0 %v649
        %v651 = vpop.xlane.xlu0 %650
        %v652 = vsub.f32 %v649, %v651
        %v653 = vmul.f32 %v652, 1.442695
        %v654 = vpow.pop %v653
        %655 = vadd.xlane.f32.xlu0 %v654
        %v656 = vpop.xlane.xlu0 %655
        %v657 = vrcp.pop %v656
        %v658 = vmul.f32 %v656, %v657
        %v659 = vsub.f32 1.0, %v658
        %v660 = vmul.f32 %v657, %v659
        %v661 = vadd.f32 %v657, %v660
        %vm662 = vweird.f32 %v656
        %vm663 = vweird.f32 %v657
        %vm664 = vmor %vm662, %vm663
        %v665 = vsel %vm664, %v657, %v661
        %v666 = vand.u32 2147483647, %v656
        %vm667 = vcmp.eq.f32.partialorder %v666, 8.507059e+37
        %v668 = vand.u32 %v656, 2147483648
        %v669 = vor.u32 1.1754944e-38, %v668
        %v670 = vsel %vm667, %v669, %v665
        %v671 = vmul.f32 1.0, %v670
        %v672 = vmul.f32 %v654, %v671
        %673 = vst [vmem:[%s372] sm:$0xff] %v672
        %s674 = sand.u32 %s215, 1
        %s675 = scalar_lea.sflag [#allocation7], %s674
        %s676 = sand.u32 %s215, 1
        %s677 = smul.addr %s676, 8
        %s678 = scalar_lea.vmem [#allocation13], %s677
        // Predicated region
        $region76: #{tpu_custom_call.1} parent=51 // pred_check
          %p679 = pneg %p225
        $region77: #{tpu_custom_call.1} parent=51 // pred_check_branch
          %681 = sbr.rel (%p679) target = $region79
        $region78: #{tpu_custom_call.1} parent=51 // pred_region
          %683 = vsyncadd %s675, 0
          %s684 = smul.addr %s34, 8
          %s685 = scalar_lea.hbm %s9, %s684
          %s687 = sshll.u32 %s678, 4
          %s688 = int_to_ptr.vmem [resolvable:$true] %s687
          %s689 = sshll.u32 %s685, 4
          %s690 = int_to_ptr.hbm [resolvable:$true] %s689
          %692 = dma.vmem_to_hbm [thread:$0]  %s688, 128, %s690, %s675
        $region79: #{tpu_custom_call.1} parent=51 // pred_fallthru
          _
      $region52: #{tpu_custom_call.1} parent=5 // pred_fallthru
        _
      %p693 = scmp.le.s32.totalorder 2, %s29
      // Predicated region
      $region80: #{tpu_custom_call.1} parent=5 // pred_check
        %p694 = pneg %p693
      $region81: #{tpu_custom_call.1} parent=5 // pred_check_branch
        %696 = sbr.rel (%p694) target = $region83
      $region82: #{tpu_custom_call.1} parent=5 // pred_region
        %s697 = ssub.s32 %s29, 2
        // Predicated region
        $region84: #{tpu_custom_call.1} parent=82 // pred_check
          %p698 = pneg %p231
        $region85: #{tpu_custom_call.1} parent=82 // pred_check_branch
          %700 = sbr.rel (%p698) target = $region87
        $region86: #{tpu_custom_call.1} parent=82 // pred_region
          %s701 = sand.u32 %s216, 1
          %s702 = scalar_lea.sflag [#allocation7], %s701
          %s703 = sand.u32 %s216, 1
          %s704 = smul.addr %s703, 8
          %s705 = scalar_lea.vmem [#allocation13], %s704
          %707 = dma.done %s702, 128
        $region87: #{tpu_custom_call.1} parent=82 // pred_fallthru
          _
      $region83: #{tpu_custom_call.1} parent=5 // pred_fallthru
        _
    $region6: #{tpu_custom_call.1} parent=1 // loop_footer
      %s33 = sadd.s32 1, %s29
    $region7: #{tpu_custom_call.1} parent=1 // loop_footer_branch
      %28 = sbr.rel target = $region3
    $region8: #{tpu_custom_call.1} parent=1 // loop_exit
      _
    %708 = vsyncpa [#allocation6], 1
    %s709 = scalar_lea.sflag [#allocation6], 1
    %710 = vsyncpa %s709, 1
    %711 = vsyncpa [#allocation9], 1
    %712 = vsyncpa [#allocation12], 1
    %713 = vsyncpa [#allocation7], 1
    %s714 = scalar_lea.sflag [#allocation7], 1
    %715 = vsyncpa %s714, 1

</llo_original>
